<compile_context>
chip_gen: v6e
topology: v6e:2x2x1
jax: 0.10.0
libtpu: 0.0.40
codegen_flags: <defaults>
</compile_context>

<pallas_src>
import jax
import jax.numpy as jnp
from jax.experimental import pallas as pl
from jax.experimental.pallas import tpu as pltpu


def _round_up(x, m):
    return (x + m - 1) // m * m


def poppernet_kernel(x_ref, w1_ref, b1_ref, w2_ref, b2_ref, o_ref):
    # hidden = x @ W1^T + b1   (torch-layout W1: [n_hidden, n_input]; contract
    # on the weights' last axis -> no wrapper-side transpose needed)
    h = jax.lax.dot_general(
        x_ref[...], w1_ref[...],
        dimension_numbers=(((1,), (1,)), ((), ())),
        preferred_element_type=jnp.float32,
    )
    h = h + b1_ref[...]                       # (1, n_hidden) broadcasts over rows

    # sigmoid(h) = 1 / (1 + exp(-h)): exp on EUP, reciprocal via EUP vrcp
    # (approx=True) instead of a VALU divide.
    s = pl.reciprocal(1.0 + jnp.exp(-h), approx=True)

    # out = sigmoid(h) @ W2^T + b2  (W2 pre-padded to a lane-dense output width)
    out = jax.lax.dot_general(
        s, w2_ref[...],
        dimension_numbers=(((1,), (1,)), ((), ())),
        preferred_element_type=jnp.float32,
    )
    out = out + b2_ref[...]                   # (1, n_out_pad)
    o_ref[...] = out.astype(o_ref.dtype)


def poppernet_forward(x, w1, b1, w2, b2, *, tm_max=512):
    """x: [B, n_input]; w1: [n_hidden, n_input] (torch layout); b1: [n_hidden];
       w2: [n_output, n_hidden]; b2: [n_output]. Returns [B, n_output]."""
    B, n_input = x.shape
    n_hidden = w1.shape[0]
    n_output = w2.shape[0]

    # --- lane-dense output: pad the output feature dim to a multiple of 128 ---
    # (In a real model this padding would be done once at parameter-init time.)
    n_out_pad = _round_up(n_output, 128)
    if n_out_pad != n_output:
        w2 = jnp.pad(w2, ((0, n_out_pad - n_output), (0, 0)))
        b2 = jnp.pad(b2, (0, n_out_pad - n_output))

    # --- batch tiling: rows in multiples of 8 sublanes, capped at tm_max ------
    tm = min(tm_max, _round_up(B, 8))
    b_pad = _round_up(B, tm)
    if b_pad != B:
        x = jnp.pad(x, ((0, b_pad - B), (0, 0)))
    grid = (b_pad // tm,)

    b1_2d = b1.reshape(1, n_hidden)
    b2_2d = b2.reshape(1, n_out_pad)

    # --- explicit VMEM budget: 2x (double-buffered) tiles + resident params ---
    vmem_bytes = 4 * (
        2 * (tm * n_input + tm * n_out_pad)                       # x / out tiles
        + 2 * (n_hidden * n_input + n_out_pad * n_hidden          # weights
               + n_hidden + n_out_pad)                            # biases
    )
    vmem_limit = min(max(vmem_bytes + (4 << 20), 16 << 20), 32 << 20)

    out_padded = pl.pallas_call(
        poppernet_kernel,
        out_shape=jax.ShapeDtypeStruct((b_pad, n_out_pad), x.dtype),
        grid_spec=pltpu.PrefetchScalarGridSpec(
            num_scalar_prefetch=0,
            grid=grid,
            in_specs=[
                # x: tiled over batch
                pl.BlockSpec((tm, n_input), lambda i: (i, 0)),
                # weights / biases: same block every step -> fetched once, resident
                pl.BlockSpec((n_hidden, n_input), lambda i: (0, 0)),
                pl.BlockSpec((1, n_hidden), lambda i: (0, 0)),
                pl.BlockSpec((n_out_pad, n_hidden), lambda i: (0, 0)),
                pl.BlockSpec((1, n_out_pad), lambda i: (0, 0)),
            ],
            out_specs=pl.BlockSpec((tm, n_out_pad), lambda i: (i, 0)),
        ),
        compiler_params=pltpu.CompilerParams(
            dimension_semantics=("parallel",),   # shard batch loop across TCs (v7x)
            vmem_limit_bytes=vmem_limit,
        ),
    )(x, w1, b1_2d, w2, b2_2d)

    # Strip batch padding and the lane padding of the output features.
    return out_padded[:B, :n_output]


def reference_forward(x, w1, b1, w2, b2):
    h = x @ w1.T + b1
    h = jax.nn.sigmoid(h)
    return h @ w2.T + b2


if __name__ == "__main__":
    # Small shapes consistent with PopperNet(n_input, n_hidden, n_output)
    batch, n_input, n_hidden, n_output = 8, 16, 32, 4

    key = jax.random.PRNGKey(0)
    kx, k1, k2, k3, k4 = jax.random.split(key, 5)

    x = jax.random.normal(kx, (batch, n_input), dtype=jnp.float32)
    # torch Linear layout: weight [out, in], bias [out]
    w1 = jax.random.normal(k1, (n_hidden, n_input), dtype=jnp.float32) * 0.1
    b1 = jax.random.normal(k2, (n_hidden,), dtype=jnp.float32) * 0.1
    w2 = jax.random.normal(k3, (n_output, n_hidden), dtype=jnp.float32) * 0.1
    b2 = jax.random.normal(k4, (n_output,), dtype=jnp.float32) * 0.1

    out = poppernet_forward(x, w1, b1, w2, b2)
    out = jax.block_until_ready(out)
    ref = reference_forward(x, w1, b1, w2, b2)
    assert out.shape == (batch, n_output)
    # Tolerance is relaxed vs exact math because the sigmoid uses the EUP
    # approximate reciprocal (vrcp); real layout/semantic bugs produce O(1e-1+)
    # errors and would still trip this check.
    assert jnp.allclose(out, ref, atol=2e-2, rtol=2e-2), "mismatch vs reference (small)"

    # Second case: batch not a multiple of the tile, multiple grid steps.
    kx2 = jax.random.fold_in(kx, 1)
    x_big = jax.random.normal(kx2, (300, n_input), dtype=jnp.float32)
    out_big = poppernet_forward(x_big, w1, b1, w2, b2, tm_max=128)
    out_big = jax.block_until_ready(out_big)
    ref_big = reference_forward(x_big, w1, b1, w2, b2)
    assert out_big.shape == (300, n_output)
    assert jnp.allclose(out_big, ref_big, atol=2e-2, rtol=2e-2), "mismatch vs reference (gridded)"

    print("KERNEL_OK")
</pallas_src>

<mosaic_0001>
module attributes {stable_mosaic.version = 11 : i64} {
  func.func @poppernet_kernel(%arg0: i32, %arg1: memref<8x16xf32, #tpu.memory_space<vmem>>, %arg2: memref<32x16xf32, #tpu.memory_space<vmem>>, %arg3: memref<1x32xf32, #tpu.memory_space<vmem>>, %arg4: memref<128x32xf32, #tpu.memory_space<vmem>>, %arg5: memref<1x128xf32, #tpu.memory_space<vmem>>, %arg6: memref<8x128xf32, #tpu.memory_space<vmem>>) attributes {dimension_semantics = [#tpu.dimension_semantics<parallel>], iteration_bounds = array<i64: 1>, scalar_prefetch = 0 : i64, scratch_operands = 0 : i64, tpu.core_type = #tpu.core_type<tc>, window_params = [{transform_indices = @transform_0, window_bounds = array<i64: 8, 16>}, {pipeline_mode = #tpu.pipeline_mode<synchronous>, transform_indices = @transform_1, window_bounds = array<i64: 32, 16>}, {pipeline_mode = #tpu.pipeline_mode<synchronous>, transform_indices = @transform_2, window_bounds = array<i64: 1, 32>}, {pipeline_mode = #tpu.pipeline_mode<synchronous>, transform_indices = @transform_3, window_bounds = array<i64: 128, 32>}, {pipeline_mode = #tpu.pipeline_mode<synchronous>, transform_indices = @transform_4, window_bounds = array<i64: 1, 128>}, {transform_indices = @transform_5, window_bounds = array<i64: 8, 128>}]} {
    %c0 = arith.constant 0 : index
    %c0_0 = arith.constant 0 : index
    %0 = vector.load %arg1[%c0, %c0_0] : memref<8x16xf32, #tpu.memory_space<vmem>>, vector<8x16xf32>
    %c0_1 = arith.constant 0 : index
    %c0_2 = arith.constant 0 : index
    %1 = vector.load %arg2[%c0_1, %c0_2] : memref<32x16xf32, #tpu.memory_space<vmem>>, vector<32x16xf32>
    %cst = arith.constant dense<0.000000e+00> : vector<8x32xf32>
    %2 = tpu.matmul %0, %1, %cst {dimension_numbers = #tpu.dot_dimension_numbers<[1], [1], [0], [0], [0, 0, 1, 0], [], []>} : vector<8x16xf32>, vector<32x16xf32>, vector<8x32xf32> -> vector<8x32xf32>
    %c0_3 = arith.constant 0 : index
    %c0_4 = arith.constant 0 : index
    %3 = vector.load %arg3[%c0_3, %c0_4] : memref<1x32xf32, #tpu.memory_space<vmem>>, vector<1x32xf32>
    %4 = vector.broadcast %3 : vector<1x32xf32> to vector<8x32xf32>
    %5 = arith.addf %2, %4 : vector<8x32xf32>
    %cst_5 = arith.constant 0.000000e+00 : f32
    %6 = vector.broadcast %cst_5 : f32 to vector<8x32xf32>
    %7 = arith.subf %6, %5 : vector<8x32xf32>
    %8 = math.exp %7 : vector<8x32xf32>
    %cst_6 = arith.constant 1.000000e+00 : f32
    %9 = vector.broadcast %cst_6 : f32 to vector<8x32xf32>
    %10 = arith.addf %9, %8 : vector<8x32xf32>
    %11 = tpu.reciprocal %10 {approx = true} : vector<8x32xf32> -> vector<8x32xf32>
    %c0_7 = arith.constant 0 : index
    %c0_8 = arith.constant 0 : index
    %12 = vector.load %arg4[%c0_7, %c0_8] : memref<128x32xf32, #tpu.memory_space<vmem>>, vector<128x32xf32>
    %cst_9 = arith.constant dense<0.000000e+00> : vector<8x128xf32>
    %13 = tpu.matmul %11, %12, %cst_9 {dimension_numbers = #tpu.dot_dimension_numbers<[1], [1], [0], [0], [0, 0, 1, 0], [], []>} : vector<8x32xf32>, vector<128x32xf32>, vector<8x128xf32> -> vector<8x128xf32>
    %c0_10 = arith.constant 0 : index
    %c0_11 = arith.constant 0 : index
    %14 = vector.load %arg5[%c0_10, %c0_11] : memref<1x128xf32, #tpu.memory_space<vmem>>, vector<1x128xf32>
    %15 = vector.broadcast %14 : vector<1x128xf32> to vector<8x128xf32>
    %16 = arith.addf %13, %15 : vector<8x128xf32>
    %c0_12 = arith.constant 0 : index
    %c0_13 = arith.constant 0 : index
    %17 = vector.load %arg6[%c0_12, %c0_13] : memref<8x128xf32, #tpu.memory_space<vmem>>, vector<8x128xf32>
    tpu.vector_store %arg6[%c0_12, %c0_13], %16 {strides = array<i32>} : memref<8x128xf32, #tpu.memory_space<vmem>>, vector<8x128xf32>,
    return
  }
  func.func @transform_0(%arg0: i32) -> (i32, i32) {
    %c0_i32 = arith.constant 0 : i32
    %c0_i32_0 = arith.constant 0 : i32
    return %arg0, %c0_i32 : i32, i32
  }
  func.func @transform_1(%arg0: i32) -> (i32, i32) {
    %c0_i32 = arith.constant 0 : i32
    %c0_i32_0 = arith.constant 0 : i32
    %c0_i32_1 = arith.constant 0 : i32
    return %c0_i32, %c0_i32_0 : i32, i32
  }
  func.func @transform_2(%arg0: i32) -> (i32, i32) {
    %c0_i32 = arith.constant 0 : i32
    %c0_i32_0 = arith.constant 0 : i32
    %c0_i32_1 = arith.constant 0 : i32
    return %c0_i32, %c0_i32_0 : i32, i32
  }
  func.func @transform_3(%arg0: i32) -> (i32, i32) {
    %c0_i32 = arith.constant 0 : i32
    %c0_i32_0 = arith.constant 0 : i32
    %c0_i32_1 = arith.constant 0 : i32
    return %c0_i32, %c0_i32_0 : i32, i32
  }
  func.func @transform_4(%arg0: i32) -> (i32, i32) {
    %c0_i32 = arith.constant 0 : i32
    %c0_i32_0 = arith.constant 0 : i32
    %c0_i32_1 = arith.constant 0 : i32
    return %c0_i32, %c0_i32_0 : i32, i32
  }
  func.func @transform_5(%arg0: i32) -> (i32, i32) {
    %c0_i32 = arith.constant 0 : i32
    %c0_i32_0 = arith.constant 0 : i32
    return %arg0, %c0_i32 : i32, i32
  }
}

</mosaic_0001>

<llo_original>
// kernel: tpu_custom_call.1
$region0: #{tpu_custom_call.1}
  #allocation0 [shape = 'u32[]', space=smem, size = 0x4, offset = 0x4, fixed_abs, tag = 'smem constant byte address 0x4 - core index']
  #allocation1 [shape = 'u32[144,128]{1,0:T(1,128)}', space=vmem, size = 0x12000, scoped, tag = 'internal scratch']
  %s0 = inlined_call_operand.vmem [shape: f32[8,16], index: 0, kind: input, shape index: {}]
  %s1 = inlined_call_operand.vmem [shape: f32[32,16], index: 1, kind: input, shape index: {}]
  %s2 = inlined_call_operand.vmem [shape: f32[1,32], index: 2, kind: input, shape index: {}]
  %s3 = inlined_call_operand.vmem [shape: f32[128,32], index: 3, kind: input, shape index: {}]
  %s4 = inlined_call_operand.vmem [shape: f32[1,128], index: 4, kind: input, shape index: {}]
  %s5 = inlined_call_operand.hbm [shape: f32[8,128], index: 5, kind: output, shape index: {}]
  %s6 = sld [smem:[#allocation0]]
  $region30: #{tpu_custom_call.1} parent=0
    _
  %s8 = ssub.s32 1, %s6
  %s9 = scalar_select 0, %s8, %s6
  $region1: #{tpu_custom_call.1} parent=0
    #allocation2 [shape = 'u8[4096]{0}', space=vmem, size = 0x1000, scoped, tag = 'output window, operand 0, single buffered']
    #allocation3 [shape = 's32[1]{0}', space=sflag, size = 0x4, scoped, tag = 'scoped memory for tpu_custom_call.1']
    %10 = vsyncpa [#allocation3], 0
    // Predicated region
    $region2: #{tpu_custom_call.1} parent=1 // pred_check
      _
    $region3: #{tpu_custom_call.1} parent=1 // pred_check_branch
      %12 = sbr.rel (0) target = $region5
    $region4: #{tpu_custom_call.1} parent=1 // pred_region
      _
    $region5: #{tpu_custom_call.1} parent=1 // pred_fallthru
      _
    // Predicated region
    $region6: #{tpu_custom_call.1} parent=1 // pred_check
      _
    $region7: #{tpu_custom_call.1} parent=1 // pred_check_branch
      %14 = sbr.rel (0) target = $region9
    $region8: #{tpu_custom_call.1} parent=1 // pred_region
      _
    $region9: #{tpu_custom_call.1} parent=1 // pred_fallthru
      _
    // Predicated region
    $region10: #{tpu_custom_call.1} parent=1 // pred_check
      _
    $region11: #{tpu_custom_call.1} parent=1 // pred_check_branch
      %16 = sbr.rel (0) target = $region13
    $region12: #{tpu_custom_call.1} parent=1 // pred_region
      _
    $region13: #{tpu_custom_call.1} parent=1 // pred_fallthru
      _
    // Predicated region
    $region14: #{tpu_custom_call.1} parent=1 // pred_check
      _
    $region15: #{tpu_custom_call.1} parent=1 // pred_check_branch
      %18 = sbr.rel (0) target = $region17
    $region16: #{tpu_custom_call.1} parent=1 // pred_region
      _
    $region17: #{tpu_custom_call.1} parent=1 // pred_fallthru
      _
    // Predicated region
    $region18: #{tpu_custom_call.1} parent=1 // pred_check
      _
    $region19: #{tpu_custom_call.1} parent=1 // pred_check_branch
      %20 = sbr.rel (0) target = $region21
    $region20: #{tpu_custom_call.1} parent=1 // pred_region
      _
    $region21: #{tpu_custom_call.1} parent=1 // pred_fallthru
      _
    %v21 = vld [vmem:[%s0] sm:$0xff]
    %v22 = vld [vmem:[%s1] sm:$0xff]
    %v23 = vld [vmem:[%s1 + $0x8] sm:$0xff]
    %v24 = vld [vmem:[%s1 + $0x10] sm:$0xff]
    %v25 = vld [vmem:[%s1 + $0x18] sm:$0xff]
    %v26 = vld [vmem:[%s2] sm:$0x1]
    %v28 = vlaneseq
    %v29 = vshrl.u32 %v28, 7
    %v30 = vsub.s32 0, %v29
    %v31 = vrot.slane %v26, %v30
    %vm33 = vcmask 130048
    %v35 = vsel %vm33, %v21, 0
    %v38 = vsel %vm33, %v22, 0
    %v41 = vsel %vm33, %v23, 0
    %v44 = vsel %vm33, %v24, 0
    %v47 = vsel %vm33, %v25, 0
    %49 = vmatprep.subr.mxu0 0.0
    %50 = vmatpush1.xpose.msra.mxu0 0.0
    %51 = vmatprep.subr.mxu0 0.0
    %52 = vmatpush1.xpose.msra.mxu0 0.0
    %53 = vmatprep.subr.mxu0 0.0
    %54 = vmatpush1.xpose.msra.mxu0 0.0
    %55 = vmatprep.subr.mxu0 0.0
    %56 = vmatpush1.xpose.msra.mxu0 0.0
    %57 = vmatprep.subr.mxu0 0.0
    %58 = vmatpush1.xpose.msra.mxu0 0.0
    %59 = vmatprep.subr.mxu0 0.0
    %60 = vmatpush1.xpose.msra.mxu0 0.0
    %61 = vmatprep.subr.mxu0 0.0
    %62 = vmatpush1.xpose.msra.mxu0 0.0
    %63 = vmatprep.subr.mxu0 0.0
    %64 = vmatpush1.xpose.msra.mxu0 0.0
    %65 = vmatprep.subr.mxu0 0.0
    %66 = vmatpush1.xpose.msra.mxu0 0.0
    %67 = vmatprep.subr.mxu0 0.0
    %68 = vmatpush1.xpose.msra.mxu0 0.0
    %69 = vmatprep.subr.mxu0 0.0
    %70 = vmatpush1.xpose.msra.mxu0 0.0
    %71 = vmatprep.subr.mxu0 0.0
    %72 = vmatpush1.xpose.msra.mxu0 0.0
    %73 = vmatprep.subr.mxu0 0.0
    %74 = vmatpush1.xpose.msra.mxu0 %v47
    %75 = vmatprep.subr.mxu0 0.0
    %76 = vmatpush1.xpose.msra.mxu0 %v44
    %77 = vmatprep.subr.mxu0 0.0
    %78 = vmatpush1.xpose.msra.mxu0 %v41
    %79 = vmatprep.subr.mxu0 0.0
    %80 = vmatpush1.xpose.msra.mxu0 %v38
    %81 = vmatprep.subr.mxu0 0.0
    %82 = vmatpush2.xpose.msra.mxu0 0.0
    %83 = vmatprep.subr.mxu0 0.0
    %84 = vmatpush2.xpose.msra.mxu0 0.0
    %85 = vmatprep.subr.mxu0 0.0
    %86 = vmatpush2.xpose.msra.mxu0 0.0
    %87 = vmatprep.subr.mxu0 0.0
    %88 = vmatpush2.xpose.msra.mxu0 0.0
    %89 = vmatprep.subr.mxu0 0.0
    %90 = vmatpush2.xpose.msra.mxu0 0.0
    %91 = vmatprep.subr.mxu0 0.0
    %92 = vmatpush2.xpose.msra.mxu0 0.0
    %93 = vmatprep.subr.mxu0 0.0
    %94 = vmatpush2.xpose.msra.mxu0 0.0
    %95 = vmatprep.subr.mxu0 0.0
    %96 = vmatpush2.xpose.msra.mxu0 0.0
    %97 = vmatprep.subr.mxu0 0.0
    %98 = vmatpush2.xpose.msra.mxu0 0.0
    %99 = vmatprep.subr.mxu0 0.0
    %100 = vmatpush2.xpose.msra.mxu0 0.0
    %101 = vmatprep.subr.mxu0 0.0
    %102 = vmatpush2.xpose.msra.mxu0 0.0
    %103 = vmatprep.subr.mxu0 0.0
    %104 = vmatpush2.xpose.msra.mxu0 0.0
    %105 = vmatprep.subr.mxu0 0.0
    %106 = vmatpush2.xpose.msra.mxu0 0.0
    %107 = vmatprep.subr.mxu0 0.0
    %108 = vmatpush2.xpose.msra.mxu0 0.0
    %109 = vmatprep.subr.mxu0 0.0
    %110 = vmatpush2.xpose.msra.mxu0 0.0
    %111 = vmatprep.subr.mxu0 0.0
    %112 = vmatpush2.xpose.msra.mxu0 0.0
    %113 = vmatprep.mubr.f32.mxu0 0.0
    %114 = vmatmul.mubr.f32.gmra.mxu0 %v35
    %v115 = vpop.f32.mrf.mxu0
    %v116 = vadd.f32 %v31, %v115
    %v117 = vpop.f32.mrf.mxu0
    %118 = vdwg.mxu0
    %v119 = vsub.f32 0.0, %v116
    %v120 = vmul.f32 %v119, 1.442695
    %v121 = vpow.pop %v120
    %v122 = vadd.f32 %v121, 1.0
    %v123 = vrcp.pop %v122
    %v124 = vld [vmem:[%s3] sm:$0xff]
    %v125 = vld [vmem:[%s3 + $0x8] sm:$0xff]
    %v126 = vld [vmem:[%s3 + $0x10] sm:$0xff]
    %v127 = vld [vmem:[%s3 + $0x18] sm:$0xff]
    %v128 = vld [vmem:[%s3 + $0x20] sm:$0xff]
    %v129 = vld [vmem:[%s3 + $0x28] sm:$0xff]
    %v130 = vld [vmem:[%s3 + $0x30] sm:$0xff]
    %v131 = vld [vmem:[%s3 + $0x38] sm:$0xff]
    %v132 = vld [vmem:[%s3 + $0x40] sm:$0xff]
    %v133 = vld [vmem:[%s3 + $0x48] sm:$0xff]
    %v134 = vld [vmem:[%s3 + $0x50] sm:$0xff]
    %v135 = vld [vmem:[%s3 + $0x58] sm:$0xff]
    %v136 = vld [vmem:[%s3 + $0x60] sm:$0xff]
    %v137 = vld [vmem:[%s3 + $0x68] sm:$0xff]
    %v138 = vld [vmem:[%s3 + $0x70] sm:$0xff]
    %v139 = vld [vmem:[%s3 + $0x78] sm:$0xff]
    %v140 = vld [vmem:[%s4] sm:$0x1]
    %v142 = vlaneseq
    %v143 = vshrl.u32 %v142, 7
    %v144 = vsub.s32 0, %v143
    %v145 = vrot.slane %v140, %v144
    %vm147 = vcmask 261120
    %v149 = vsel %vm147, %v123, 0
    %v152 = vsel %vm147, %v124, 0
    %v155 = vsel %vm147, %v125, 0
    %v158 = vsel %vm147, %v126, 0
    %v161 = vsel %vm147, %v127, 0
    %v164 = vsel %vm147, %v128, 0
    %v167 = vsel %vm147, %v129, 0
    %v170 = vsel %vm147, %v130, 0
    %v173 = vsel %vm147, %v131, 0
    %v176 = vsel %vm147, %v132, 0
    %v179 = vsel %vm147, %v133, 0
    %v182 = vsel %vm147, %v134, 0
    %v185 = vsel %vm147, %v135, 0
    %v188 = vsel %vm147, %v136, 0
    %v191 = vsel %vm147, %v137, 0
    %v194 = vsel %vm147, %v138, 0
    %v197 = vsel %vm147, %v139, 0
    %199 = vmatprep.subr.mxu0 0.0
    %200 = vmatpush1.xpose.msra.mxu0 %v197
    %201 = vmatprep.subr.mxu0 0.0
    %202 = vmatpush1.xpose.msra.mxu0 %v194
    %203 = vmatprep.subr.mxu0 0.0
    %204 = vmatpush1.xpose.msra.mxu0 %v191
    %205 = vmatprep.subr.mxu0 0.0
    %206 = vmatpush1.xpose.msra.mxu0 %v188
    %207 = vmatprep.subr.mxu0 0.0
    %208 = vmatpush1.xpose.msra.mxu0 %v185
    %209 = vmatprep.subr.mxu0 0.0
    %210 = vmatpush1.xpose.msra.mxu0 %v182
    %211 = vmatprep.subr.mxu0 0.0
    %212 = vmatpush1.xpose.msra.mxu0 %v179
    %213 = vmatprep.subr.mxu0 0.0
    %214 = vmatpush1.xpose.msra.mxu0 %v176
    %215 = vmatprep.subr.mxu0 0.0
    %216 = vmatpush1.xpose.msra.mxu0 %v173
    %217 = vmatprep.subr.mxu0 0.0
    %218 = vmatpush1.xpose.msra.mxu0 %v170
    %219 = vmatprep.subr.mxu0 0.0
    %220 = vmatpush1.xpose.msra.mxu0 %v167
    %221 = vmatprep.subr.mxu0 0.0
    %222 = vmatpush1.xpose.msra.mxu0 %v164
    %223 = vmatprep.subr.mxu0 0.0
    %224 = vmatpush1.xpose.msra.mxu0 %v161
    %225 = vmatprep.subr.mxu0 0.0
    %226 = vmatpush1.xpose.msra.mxu0 %v158
    %227 = vmatprep.subr.mxu0 0.0
    %228 = vmatpush1.xpose.msra.mxu0 %v155
    %229 = vmatprep.subr.mxu0 0.0
    %230 = vmatpush1.xpose.msra.mxu0 %v152
    %231 = vmatprep.subr.mxu0 0.0
    %232 = vmatpush2.xpose.msra.mxu0 0.0
    %233 = vmatprep.subr.mxu0 0.0
    %234 = vmatpush2.xpose.msra.mxu0 0.0
    %235 = vmatprep.subr.mxu0 0.0
    %236 = vmatpush2.xpose.msra.mxu0 0.0
    %237 = vmatprep.subr.mxu0 0.0
    %238 = vmatpush2.xpose.msra.mxu0 0.0
    %239 = vmatprep.subr.mxu0 0.0
    %240 = vmatpush2.xpose.msra.mxu0 0.0
    %241 = vmatprep.subr.mxu0 0.0
    %242 = vmatpush2.xpose.msra.mxu0 0.0
    %243 = vmatprep.subr.mxu0 0.0
    %244 = vmatpush2.xpose.msra.mxu0 0.0
    %245 = vmatprep.subr.mxu0 0.0
    %246 = vmatpush2.xpose.msra.mxu0 0.0
    %247 = vmatprep.subr.mxu0 0.0
    %248 = vmatpush2.xpose.msra.mxu0 0.0
    %249 = vmatprep.subr.mxu0 0.0
    %250 = vmatpush2.xpose.msra.mxu0 0.0
    %251 = vmatprep.subr.mxu0 0.0
    %252 = vmatpush2.xpose.msra.mxu0 0.0
    %253 = vmatprep.subr.mxu0 0.0
    %254 = vmatpush2.xpose.msra.mxu0 0.0
    %255 = vmatprep.subr.mxu0 0.0
    %256 = vmatpush2.xpose.msra.mxu0 0.0
    %257 = vmatprep.subr.mxu0 0.0
    %258 = vmatpush2.xpose.msra.mxu0 0.0
    %259 = vmatprep.subr.mxu0 0.0
    %260 = vmatpush2.xpose.msra.mxu0 0.0
    %261 = vmatprep.subr.mxu0 0.0
    %262 = vmatpush2.xpose.msra.mxu0 0.0
    %263 = vmatprep.mubr.f32.mxu0 0.0
    %264 = vmatmul.mubr.f32.gmra.mxu0 %v149
    %v265 = vpop.f32.mrf.mxu0
    %v266 = vadd.f32 %v145, %v265
    %v267 = vpop.f32.mrf.mxu0
    %268 = vdwg.mxu0
    %269 = vst [vmem:[#allocation2] sm:$0xff] %v266
    // Predicated region
    $region22: #{tpu_custom_call.1} parent=1 // pred_check
      _
    $region23: #{tpu_custom_call.1} parent=1 // pred_check_branch
      %271 = sbr.rel (0) target = $region25
    $region24: #{tpu_custom_call.1} parent=1 // pred_region
      %s273 = ssub.s32 128, 128
      %274 = vsyncadd [#allocation3], %s273
      %s276 = sshll.u32 [#allocation2], 4
      %s277 = int_to_ptr.vmem [resolvable:$true] %s276
      %279 = dma.vmem_to_hbm [thread:$0]  %s277, 128, %s5, [#allocation3]
    $region25: #{tpu_custom_call.1} parent=1 // pred_fallthru
      _
    // Predicated region
    $region26: #{tpu_custom_call.1} parent=1 // pred_check
      _
    $region27: #{tpu_custom_call.1} parent=1 // pred_check_branch
      %281 = sbr.rel (0) target = $region29
    $region28: #{tpu_custom_call.1} parent=1 // pred_region
      %282 = dma.done [#allocation3], 128
    $region29: #{tpu_custom_call.1} parent=1 // pred_fallthru
      _
    %283 = vsyncpa [#allocation3], 1

</llo_original>
